<compile_context>
chip_gen: v7x
topology: tpu7x:2x2x1
jax: 0.10.0
libtpu: 0.0.40
codegen_flags: <defaults>
</compile_context>

<pallas_src>
import functools

import jax
import jax.numpy as jnp
from jax.experimental import pallas as pl
from jax.experimental.pallas import tpu as pltpu


_M_BLOCK_CAP = 256          # max rows per M block (bounds acc/out VMEM on v7x)
_VMEM_HEADROOM = 6 << 20    # left for compiler-internal scratch


def _vmem_cap_bytes():
    """Per-generation scoped-VMEM cap (physical: 64 MiB v7x, 128 MiB v5e/v6e)."""
    try:
        kind = jax.devices()[0].device_kind.lower()
    except Exception:  # pragma: no cover - be robust to odd backends
        kind = ""
    if "v7" in kind or "tpu7" in kind:
        return 50 << 20
    return 100 << 20


def _pick_tile(dim, target, align=128):
    """Largest multiple of `align` that divides `dim` and is <= target.

    Falls back to the full dimension when `dim` has no 128-aligned divisor
    (full-extent blocks are always legal)."""
    if dim <= align or dim % align != 0:
        return dim
    best = align
    t = align
    limit = min(dim, target)
    while t <= limit:
        if dim % t == 0:
            best = t
        t += align
    return best


def _pick_tn(N, target):
    # Keep >= 2 blocks along N so the "parallel" axis can actually shard across
    # megacore / the two v7x TensorCores (never collapse N into one block).
    if N >= 256 and N % 128 == 0:
        target = min(target, N // 2)
    return _pick_tile(N, target)


def _tile_footprint(tm, tk, tn, x_isize, w_isize, out_isize):
    """VMEM bytes for one grid step (double buffers already included)."""
    return (2 * tm * tk * x_isize       # x double buffer
            + 2 * tk * tn * w_isize     # weight double buffer
            + 2 * 1 * tn * 4            # bias double buffer (f32)
            + 2 * tm * tn * out_isize   # output double buffer
            + tm * tn * 4)              # f32 accumulator scratch


def _choose_tiles(tm, K, N, x_isize, w_isize, out_isize, budget,
                  target_tn, target_tk):
    tn = _pick_tn(N, target_tn)
    tk = _pick_tile(K, target_tk)
    # Shrink tiles (widest first) until the footprint fits the VMEM budget.
    while _tile_footprint(tm, tk, tn, x_isize, w_isize, out_isize) > budget:
        if tn >= tk and tn > 128:
            new_tn = _pick_tile(N, tn // 2)
            if new_tn < tn:
                tn = new_tn
                continue
        if tk > 128:
            new_tk = _pick_tile(K, tk // 2)
            if new_tk < tk:
                tk = new_tk
                continue
        break  # cannot shrink further; footprint is already tiny in practice
    return tn, tk


def _linear_kernel(x_ref, w_ref, b_ref, o_ref, acc_ref, *, apply_relu):
    """One (tm, tn) output tile, reducing over the K grid axis (axis 2)."""
    k = pl.program_id(2)

    prod = jnp.dot(x_ref[...], w_ref[...], preferred_element_type=jnp.float32)

    @pl.when(k == 0)
    def _():
        acc_ref[...] = prod          # direct assign: no zero-fill pass

    @pl.when(k > 0)
    def _():
        acc_ref[...] += prod

    @pl.when(k == pl.num_programs(2) - 1)
    def _():
        out = acc_ref[...] + b_ref[...]          # bias already f32 (1, tn)
        if apply_relu:
            out = jnp.maximum(out, 0.0)
        o_ref[...] = out.astype(o_ref.dtype)


def pallas_linear(x, w, b2, *, apply_relu, target_tn=4096, target_tk=2048,
                  out_dtype=jnp.bfloat16):
    """y = relu?(x @ w + b); x:[M,K] bf16, w:[K,N] bf16, b2:[1,N] f32 -> [M,N]."""
    M, K = x.shape
    K2, N = w.shape
    assert K == K2 and b2.shape == (1, N)

    tm = M if M <= _M_BLOCK_CAP else _M_BLOCK_CAP
    assert M % tm == 0, "caller must pad the batch to a multiple of the M block"

    cap = _vmem_cap_bytes()
    budget = cap - _VMEM_HEADROOM

    x_isize = jnp.dtype(x.dtype).itemsize
    w_isize = jnp.dtype(w.dtype).itemsize
    out_isize = jnp.dtype(out_dtype).itemsize

    tn, tk = _choose_tiles(tm, K, N, x_isize, w_isize, out_isize, budget,
                           target_tn, target_tk)

    footprint = _tile_footprint(tm, tk, tn, x_isize, w_isize, out_isize)
    vmem_limit = int(max(min(footprint + _VMEM_HEADROOM, cap), 32 << 20))

    kernel = functools.partial(_linear_kernel, apply_relu=apply_relu)

    # NOTE: at large batch the weight tiles re-stream once per M block; for the
    # intended inference batch sizes (<= 256 rows) there is a single M block and
    # each weight is streamed exactly once (HBM weight-streaming roofline).
    return pl.pallas_call(
        kernel,
        out_shape=jax.ShapeDtypeStruct((M, N), out_dtype),
        grid_spec=pltpu.PrefetchScalarGridSpec(
            num_scalar_prefetch=0,
            grid=(M // tm, N // tn, K // tk),
            in_specs=[
                pl.BlockSpec((tm, tk), lambda i, j, k: (i, k)),
                pl.BlockSpec((tk, tn), lambda i, j, k: (k, j)),
                pl.BlockSpec((1, tn), lambda i, j, k: (0, j)),
            ],
            out_specs=pl.BlockSpec((tm, tn), lambda i, j, k: (i, j)),
            scratch_shapes=[pltpu.VMEM((tm, tn), jnp.float32)],
        ),
        compiler_params=pltpu.CompilerParams(
            dimension_semantics=("parallel", "parallel", "arbitrary"),
            vmem_limit_bytes=vmem_limit,
        ),
    )(x, w, b2)


def _padded_k(K, target_tk):
    """Pad K so tk=target_tk divides it (real scale: 46848 -> 47104 = 23*2048)."""
    if K <= target_tk:
        return ((K + 127) // 128) * 128
    return ((K + target_tk - 1) // target_tk) * target_tk


def prepare_params(params, *, target_tk=2048):
    """One-time parameter prep (outside the forward, not re-done per call):

    * weights -> bf16, biases -> f32 reshaped to (1, N);
    * layer-1 K dimension zero-padded to a multiple of target_tk so the big
      tk=2048 tile applies to layer 1 as well (zero rows contribute nothing)."""
    w1, b1, w2, b2, w3, b3 = params
    K = w1.shape[0]
    Kp = _padded_k(K, target_tk)
    w1 = w1.astype(jnp.bfloat16)
    if Kp != K:
        w1 = jnp.pad(w1, ((0, Kp - K), (0, 0)))
    return (w1,
            b1.reshape(1, -1).astype(jnp.float32),
            w2.astype(jnp.bfloat16),
            b2.reshape(1, -1).astype(jnp.float32),
            w3.astype(jnp.bfloat16),
            b3.astype(jnp.float32))


def protein_regressor_forward(embed, prepared_params):
    """embed: [B, hidden_size] float32. Returns [B, 1] float32 (eval mode)."""
    w1, b1, w2, b2, w3, b3 = prepared_params
    B, K = embed.shape
    Kp = w1.shape[0]

    # Pad batch: multiple of 16 (bf16 sublane packing) for small batches, or a
    # multiple of the M block cap so the M grid axis tiles evenly.  Padded rows
    # are zeros and are sliced off at the end; padded K columns are zeros and
    # multiply the zero-padded weight rows, so results are unchanged.
    if B <= _M_BLOCK_CAP:
        Bp = max(16, ((B + 15) // 16) * 16)
    else:
        Bp = ((B + _M_BLOCK_CAP - 1) // _M_BLOCK_CAP) * _M_BLOCK_CAP

    xb = embed.astype(jnp.bfloat16)
    pad_rows, pad_cols = Bp - B, Kp - K
    if pad_rows or pad_cols:
        xb = jnp.pad(xb, ((0, pad_rows), (0, pad_cols)))

    h1 = pallas_linear(xb, w1, b1, apply_relu=True)
    # Dropout(p=0.1): identity in eval mode.
    h2 = pallas_linear(h1, w2, b2, apply_relu=True)
    # Dropout(p=0.1): identity in eval mode.

    # Final 4096 -> 1 regression head: single output lane; a plain XLA dot is
    # cheaper than a lane-padded Pallas launch.
    y = jnp.dot(h2, w3, preferred_element_type=jnp.float32) + b3
    return y[:B].astype(jnp.float32)


def _init_linear(key, fan_in, fan_out):
    """PyTorch nn.Linear default init: U(-1/sqrt(fan_in), +1/sqrt(fan_in))."""
    kw, kb = jax.random.split(key)
    bound = 1.0 / jnp.sqrt(jnp.float32(fan_in))
    w = jax.random.uniform(kw, (fan_in, fan_out), jnp.float32, -bound, bound)
    b = jax.random.uniform(kb, (fan_out,), jnp.float32, -bound, bound)
    return w, b


if __name__ == "__main__":
    # Small, shape-consistent stand-ins for hidden_size=46848 -> 16384 -> 4096 -> 1
    HIDDEN_SIZE = 512
    H1 = 256
    H2 = 128
    BATCH = 8

    key = jax.random.PRNGKey(0)
    k_x, k1, k2, k3 = jax.random.split(key, 4)

    embed = jax.random.normal(k_x, (BATCH, HIDDEN_SIZE), jnp.float32)
    w1, b1 = _init_linear(k1, HIDDEN_SIZE, H1)
    w2, b2 = _init_linear(k2, H1, H2)
    w3, b3 = _init_linear(k3, H2, 1)

    prepared = prepare_params((w1, b1, w2, b2, w3, b3))

    out = protein_regressor_forward(embed, prepared)
    out = jax.block_until_ready(out)

    # Sanity check against a plain-JAX reference (bf16 matmuls, f32 accumulate).
    def ref(x):
        h = jnp.maximum(
            jnp.dot(x.astype(jnp.bfloat16), w1.astype(jnp.bfloat16),
                    preferred_element_type=jnp.float32) + b1, 0.0
        ).astype(jnp.bfloat16)
        h = jnp.maximum(
            jnp.dot(h, w2.astype(jnp.bfloat16),
                    preferred_element_type=jnp.float32) + b2, 0.0
        ).astype(jnp.bfloat16)
        return (jnp.dot(h, w3.astype(jnp.bfloat16),
                        preferred_element_type=jnp.float32) + b3)

    expected = ref(embed)
    assert out.shape == (BATCH, 1), out.shape
    assert jnp.allclose(out, expected, rtol=2e-2, atol=2e-2), (out, expected)

    print("KERNEL_OK")
</pallas_src>

<mosaic_0001>
module attributes {stable_mosaic.version = 11 : i64} {
  func.func @_linear_kernel(%arg0: i32, %arg1: i32, %arg2: i32, %arg3: memref<16x512xbf16, #tpu.memory_space<vmem>>, %arg4: memref<512x128xbf16, #tpu.memory_space<vmem>>, %arg5: memref<1x128xf32, #tpu.memory_space<vmem>>, %arg6: memref<16x128xbf16, #tpu.memory_space<vmem>>, %arg7: memref<16x128xf32, #tpu.memory_space<vmem>>) attributes {dimension_semantics = [#tpu.dimension_semantics<parallel>, #tpu.dimension_semantics<parallel>, #tpu.dimension_semantics<arbitrary>], iteration_bounds = array<i64: 1, 2, 1>, scalar_prefetch = 0 : i64, scratch_operands = 1 : i64, tpu.core_type = #tpu.core_type<tc>, window_params = [{transform_indices = @transform_0, window_bounds = array<i64: 16, 512>}, {transform_indices = @transform_1, window_bounds = array<i64: 512, 128>}, {transform_indices = @transform_2, window_bounds = array<i64: 1, 128>}, {transform_indices = @transform_3, window_bounds = array<i64: 16, 128>}]} {
    %c0 = arith.constant 0 : index
    %c0_0 = arith.constant 0 : index
    %0 = vector.load %arg3[%c0, %c0_0] : memref<16x512xbf16, #tpu.memory_space<vmem>>, vector<16x512xbf16>
    %c0_1 = arith.constant 0 : index
    %c0_2 = arith.constant 0 : index
    %1 = vector.load %arg4[%c0_1, %c0_2] : memref<512x128xbf16, #tpu.memory_space<vmem>>, vector<512x128xbf16>
    %cst = arith.constant dense<0.000000e+00> : vector<16x128xf32>
    %2 = tpu.matmul %0, %1, %cst {dimension_numbers = #tpu.dot_dimension_numbers<[1], [0], [0], [1], [0, 0, 1, 1], [], []>} : vector<16x512xbf16>, vector<512x128xbf16>, vector<16x128xf32> -> vector<16x128xf32>
    %c0_i32 = arith.constant 0 : i32
    %3 = arith.cmpi eq, %arg2, %c0_i32 : i32
    %4 = arith.extui %3 : i1 to i32
    %c0_i32_3 = arith.constant 0 : i32
    %5 = arith.cmpi ne, %4, %c0_i32_3 : i32
    scf.if %5 {
      %c0_8 = arith.constant 0 : index
      %c0_9 = arith.constant 0 : index
      %12 = vector.load %arg7[%c0_8, %c0_9] : memref<16x128xf32, #tpu.memory_space<vmem>>, vector<16x128xf32>
      tpu.vector_store %arg7[%c0_8, %c0_9], %2 {strides = array<i32>} : memref<16x128xf32, #tpu.memory_space<vmem>>, vector<16x128xf32>,
    } else {
    }
    %c0_i32_4 = arith.constant 0 : i32
    %6 = arith.cmpi sgt, %arg2, %c0_i32_4 : i32
    %7 = arith.extui %6 : i1 to i32
    %c0_i32_5 = arith.constant 0 : i32
    %8 = arith.cmpi ne, %7, %c0_i32_5 : i32
    scf.if %8 {
      %c0_8 = arith.constant 0 : index
      %c0_9 = arith.constant 0 : index
      %12 = vector.load %arg7[%c0_8, %c0_9] : memref<16x128xf32, #tpu.memory_space<vmem>>, vector<16x128xf32>
      %13 = arith.addf %12, %2 : vector<16x128xf32>
      %c0_10 = arith.constant 0 : index
      %c0_11 = arith.constant 0 : index
      %14 = vector.load %arg7[%c0_10, %c0_11] : memref<16x128xf32, #tpu.memory_space<vmem>>, vector<16x128xf32>
      tpu.vector_store %arg7[%c0_10, %c0_11], %13 {strides = array<i32>} : memref<16x128xf32, #tpu.memory_space<vmem>>, vector<16x128xf32>,
    } else {
    }
    %c0_i32_6 = arith.constant 0 : i32
    %9 = arith.cmpi eq, %arg2, %c0_i32_6 : i32
    %10 = arith.extui %9 : i1 to i32
    %c0_i32_7 = arith.constant 0 : i32
    %11 = arith.cmpi ne, %10, %c0_i32_7 : i32
    scf.if %11 {
      %c0_8 = arith.constant 0 : index
      %c0_9 = arith.constant 0 : index
      %12 = vector.load %arg7[%c0_8, %c0_9] : memref<16x128xf32, #tpu.memory_space<vmem>>, vector<16x128xf32>
      %c0_10 = arith.constant 0 : index
      %c0_11 = arith.constant 0 : index
      %13 = vector.load %arg5[%c0_10, %c0_11] : memref<1x128xf32, #tpu.memory_space<vmem>>, vector<1x128xf32>
      %14 = vector.broadcast %13 : vector<1x128xf32> to vector<16x128xf32>
      %15 = arith.addf %12, %14 : vector<16x128xf32>
      %cst_12 = arith.constant 0.000000e+00 : f32
      %16 = vector.broadcast %cst_12 : f32 to vector<16x128xf32>
      %17 = arith.maximumf %15, %16 : vector<16x128xf32>
      %18 = arith.truncf %17 : vector<16x128xf32> to vector<16x128xbf16>
      %c0_13 = arith.constant 0 : index
      %c0_14 = arith.constant 0 : index
      %19 = vector.load %arg6[%c0_13, %c0_14] : memref<16x128xbf16, #tpu.memory_space<vmem>>, vector<16x128xbf16>
      tpu.vector_store %arg6[%c0_13, %c0_14], %18 {strides = array<i32>} : memref<16x128xbf16, #tpu.memory_space<vmem>>, vector<16x128xbf16>,
    } else {
    }
    return
  }
  func.func @transform_0(%arg0: i32, %arg1: i32, %arg2: i32) -> (i32, i32) {
    %c0_i32 = arith.constant 0 : i32
    return %arg0, %arg2 : i32, i32
  }
  func.func @transform_1(%arg0: i32, %arg1: i32, %arg2: i32) -> (i32, i32) {
    %c0_i32 = arith.constant 0 : i32
    return %arg2, %arg1 : i32, i32
  }
  func.func @transform_2(%arg0: i32, %arg1: i32, %arg2: i32) -> (i32, i32) {
    %c0_i32 = arith.constant 0 : i32
    %c0_i32_0 = arith.constant 0 : i32
    return %c0_i32, %arg1 : i32, i32
  }
  func.func @transform_3(%arg0: i32, %arg1: i32, %arg2: i32) -> (i32, i32) {
    %c0_i32 = arith.constant 0 : i32
    return %arg0, %arg1 : i32, i32
  }
}

</mosaic_0001>

<llo_original>
// kernel: tpu_custom_call.1
$region0: #{tpu_custom_call.1}
  #allocation0 [shape = 'u32[]', space=smem, size = 0x4, offset = 0x4, fixed_abs, tag = 'smem constant byte address 0x4 - core index']
  #allocation1 [shape = 'u32[144,128]{1,0:T(1,128)}', space=vmem, size = 0x12000, scoped, tag = 'internal scratch']
  #allocation2 [shape = 'f32[16,128]{1,0:T(8,128)}', space=vmem, size = 0x2000, scoped, tag = 'scratch operand']
  %s0 = inlined_call_operand.hbm [shape: bf16[16,512], index: 0, kind: input, shape index: {}]
  %s1 = inlined_call_operand.hbm [shape: bf16[512,256], index: 1, kind: input, shape index: {}]
  %s2 = inlined_call_operand.vmem [shape: f32[1,256], index: 2, kind: input, shape index: {}]
  %s3 = inlined_call_operand.hbm [shape: bf16[16,256], index: 3, kind: output, shape index: {}]
  %s4 = sld [smem:[#allocation0]]
  $region65: #{tpu_custom_call.1} parent=0
    _
  %s6 = ssub.s32 1, %s4
  %s7 = scalar_select 0, %s6, %s4
  $region1: #{tpu_custom_call.1} parent=0
    #allocation3 [shape = 'u8[16384]{0}', space=vmem, size = 0x4000, scoped, tag = 'input window, operand 0, single buffered']
    #allocation4 [shape = 's32[2]{0}', space=sflag, size = 0x8, scoped, tag = 'scoped memory for tpu_custom_call.1']
    #allocation5 [shape = 's32[2]{0}', space=sflag, size = 0x8, scoped, tag = 'scoped memory for tpu_custom_call.1']
    #allocation6 [shape = 'u8[262144]{0}', space=vmem, size = 0x40000, scoped, tag = 'input window, operand 1']
    #allocation7 [shape = 's32[2]{0}', space=sflag, size = 0x8, scoped, tag = 'scoped memory for tpu_custom_call.1']
    #allocation8 [shape = 'u8[8192]{0}', space=vmem, size = 0x2000, scoped, tag = 'output window, operand 0']
    %8 = vsyncpa [#allocation4], 0
    %9 = vsyncpa [#allocation7], 0
    %s10 = scalar_lea.sflag [#allocation7], 1
    %11 = vsyncpa %s10, 0
    %12 = vsyncpa [#allocation5], 0
    %s13 = scalar_lea.sflag [#allocation5], 1
    %14 = vsyncpa %s13, 0
    loop: start=0, step=1, limit=4
    $region2: #{tpu_custom_call.1} parent=1 // loop_pre_header
      _
    $region3: #{tpu_custom_call.1} parent=1 // loop_header
      %s16 = sphi 0, %s20
      %p17 = scmp.ge.s32.totalorder %s16, 4
      %s23 = sphi 0, %s42
      %s24 = sphi 0, %s38
      %s25 = sphi 0, %s34
      %s26 = sphi 0, %s23
      %s27 = sphi 0, %s24
      %s28 = sphi 0, %s25
      %s29 = sphi 0, %s26
      %s30 = sphi 0, %s27
      %s31 = sphi 0, %s28
      %s47 = sphi 0, %s49
      %s50 = sphi 0, %s47
      %s51 = sphi 0, %s50
      %s67 = sphi 0, %s51
      %s75 = sphi 0, %s77
      %s78 = sphi 0, %s75
      %s79 = sphi 0, %s78
      %s95 = sphi 0, %s79
      %s101 = sphi 0, %s103
      %s104 = sphi 0, %s101
      %s105 = sphi 0, %s104
      %s121 = sphi 0, %s105
      %s129 = sphi 0, %s131
      %s132 = sphi 0, %s129
      %s133 = sphi 0, %s132
      %s149 = sphi 0, %s133
    $region4: #{tpu_custom_call.1} parent=1 // loop_header_branch
      %19 = sbr.rel (%p17) target = $region8
    $region5: #{tpu_custom_call.1} parent=1 // loop_body
      %s21 = ssub.s32 %s16, 1
      %s22 = ssub.s32 %s16, 2
      %s32 = sadd.s32 1, %s25
      %p33 = scmp.ge.s32.totalorder %s32, 1
      %s34 = scalar_select %p33, 0, %s32
      %s35 = sadd.s32 1, %s24
      %s36 = scalar_select %p33, %s35, %s24
      %p37 = scmp.ge.s32.totalorder %s36, 2
      %s38 = scalar_select %p37, 0, %s36
      %s39 = sadd.s32 1, %s23
      %s40 = scalar_select %p37, %s39, %s23
      %p41 = scmp.ge.s32.totalorder %s40, 1
      %s42 = scalar_select %p41, 0, %s40
      %s43 = ssub.s32 %s23, %s42
      %s44 = ssub.s32 %s25, %s34
      %s45 = sor.u32 %s43, %s44
      %p46 = scmp.eq.s32.totalorder %s45, 0
      %s48 = sadd.s32 %s47, 1
      %s49 = scalar_select %p46, %s47, %s48
      %p52 = pneg %p46
      %p53 = scmp.eq.s32.totalorder %s16, 1
      %p54 = por %p52, %p53
      %p55 = scmp.ne.s32.totalorder %s47, %s50
      %p56 = scmp.eq.s32.totalorder %s16, 0
      %p57 = por %p55, %p56
      %p58 = scmp.ne.s32.totalorder %s47, %s50
      %p59 = scmp.eq.s32.totalorder %s21, 1
      %p60 = por %p58, %p59
      %p61 = scmp.ne.s32.totalorder %s50, %s51
      %p62 = scmp.eq.s32.totalorder %s21, 0
      %p63 = por %p61, %p62
      %p64 = scmp.ne.s32.totalorder %s50, %s51
      %p65 = scmp.eq.s32.totalorder %s22, 1
      %p66 = por %p64, %p65
      %p68 = scmp.ne.s32.totalorder %s51, %s67
      %p69 = scmp.eq.s32.totalorder %s22, 0
      %p70 = por %p68, %p69
      %s71 = ssub.s32 %s25, %s34
      %s72 = ssub.s32 %s24, %s38
      %s73 = sor.u32 %s71, %s72
      %p74 = scmp.eq.s32.totalorder %s73, 0
      %s76 = sadd.s32 %s75, 1
      %s77 = scalar_select %p74, %s75, %s76
      %p80 = pneg %p74
      %p81 = scmp.eq.s32.totalorder %s16, 1
      %p82 = por %p80, %p81
      %p83 = scmp.ne.s32.totalorder %s75, %s78
      %p84 = scmp.eq.s32.totalorder %s16, 0
      %p85 = por %p83, %p84
      %p86 = scmp.ne.s32.totalorder %s75, %s78
      %p87 = scmp.eq.s32.totalorder %s21, 1
      %p88 = por %p86, %p87
      %p89 = scmp.ne.s32.totalorder %s78, %s79
      %p90 = scmp.eq.s32.totalorder %s21, 0
      %p91 = por %p89, %p90
      %p92 = scmp.ne.s32.totalorder %s78, %s79
      %p93 = scmp.eq.s32.totalorder %s22, 1
      %p94 = por %p92, %p93
      %p96 = scmp.ne.s32.totalorder %s79, %s95
      %p97 = scmp.eq.s32.totalorder %s22, 0
      %p98 = por %p96, %p97
      %s99 = ssub.s32 %s24, %s38
      %p100 = scmp.eq.s32.totalorder %s99, 0
      %s102 = sadd.s32 %s101, 1
      %s103 = scalar_select %p100, %s101, %s102
      %p106 = pneg %p100
      %p107 = scmp.eq.s32.totalorder %s16, 1
      %p108 = por %p106, %p107
      %p109 = scmp.ne.s32.totalorder %s101, %s104
      %p110 = scmp.eq.s32.totalorder %s16, 0
      %p111 = por %p109, %p110
      %p112 = scmp.ne.s32.totalorder %s101, %s104
      %p113 = scmp.eq.s32.totalorder %s21, 1
      %p114 = por %p112, %p113
      %p115 = scmp.ne.s32.totalorder %s104, %s105
      %p116 = scmp.eq.s32.totalorder %s21, 0
      %p117 = por %p115, %p116
      %p118 = scmp.ne.s32.totalorder %s104, %s105
      %p119 = scmp.eq.s32.totalorder %s22, 1
      %p120 = por %p118, %p119
      %p122 = scmp.ne.s32.totalorder %s105, %s121
      %p123 = scmp.eq.s32.totalorder %s22, 0
      %p124 = por %p122, %p123
      %s125 = ssub.s32 %s23, %s42
      %s126 = ssub.s32 %s24, %s38
      %s127 = sor.u32 %s125, %s126
      %p128 = scmp.eq.s32.totalorder %s127, 0
      %s130 = sadd.s32 %s129, 1
      %s131 = scalar_select %p128, %s129, %s130
      %p134 = pneg %p128
      %p135 = scmp.eq.s32.totalorder %s16, 1
      %p136 = por %p134, %p135
      %p137 = scmp.ne.s32.totalorder %s129, %s132
      %p138 = scmp.eq.s32.totalorder %s16, 0
      %p139 = por %p137, %p138
      %p140 = scmp.ne.s32.totalorder %s129, %s132
      %p141 = scmp.eq.s32.totalorder %s21, 1
      %p142 = por %p140, %p141
      %p143 = scmp.ne.s32.totalorder %s132, %s133
      %p144 = scmp.eq.s32.totalorder %s21, 0
      %p145 = por %p143, %p144
      %p146 = scmp.ne.s32.totalorder %s132, %s133
      %p147 = scmp.eq.s32.totalorder %s22, 1
      %p148 = por %p146, %p147
      %p150 = scmp.ne.s32.totalorder %s133, %s149
      %p151 = scmp.eq.s32.totalorder %s22, 0
      %p152 = por %p150, %p151
      %p153 = scmp.le.s32.totalorder 1, %s16
      %p154 = scmp.lt.s32.totalorder %s16, 3
      %p155 = pnand %p153, %p154
      %p156 = pneg %p155
      // Predicated region
      $region9: #{tpu_custom_call.1} parent=5 // pred_check
        _
      $region10: #{tpu_custom_call.1} parent=5 // pred_check_branch
        %158 = sbr.rel (%p155) target = $region12
      $region11: #{tpu_custom_call.1} parent=5 // pred_region
        %s159 = ssub.s32 %s16, 1
        // Predicated region
        $region13: #{tpu_custom_call.1} parent=11 // pred_check
          %p160 = pneg %p63
        $region14: #{tpu_custom_call.1} parent=11 // pred_check_branch
          %162 = sbr.rel (%p160) target = $region16
        $region15: #{tpu_custom_call.1} parent=11 // pred_region
          %s163 = smul.u32 2, %s26
          %s164 = smul.u32 4, %s28
          %s166 = ssub.s32 512, 512
          %167 = vsyncadd [#allocation4], %s166
          %s168 = smul.addr %s163, 4
          %s169 = sadd.s32 %s164, %s168
          %s170 = smul.addr %s169, 64
          %s171 = scalar_lea.hbm %s0, %s170
          %s172 = sshll.u32 [#allocation3], 4
          %s173 = int_to_ptr.vmem [resolvable:$true] %s172
          %178 = dma.hbm_to_vmem [thread:$0]  %s171, 512, %s173, [#allocation4], 256, 256, 16
        $region16: #{tpu_custom_call.1} parent=11 // pred_fallthru
          _
      $region12: #{tpu_custom_call.1} parent=5 // pred_fallthru
        _
      %p179 = scmp.lt.s32.totalorder %s16, 2
      // Predicated region
      $region17: #{tpu_custom_call.1} parent=5 // pred_check
        %p180 = pneg %p179
      $region18: #{tpu_custom_call.1} parent=5 // pred_check_branch
        %182 = sbr.rel (%p180) target = $region20
      $region19: #{tpu_custom_call.1} parent=5 // pred_region
        // Predicated region
        $region21: #{tpu_custom_call.1} parent=19 // pred_check
          %p183 = pneg %p85
        $region22: #{tpu_custom_call.1} parent=19 // pred_check_branch
          %185 = sbr.rel (%p183) target = $region24
        $region23: #{tpu_custom_call.1} parent=19 // pred_region
          %s186 = sand.u32 %s75, 1
          %s187 = scalar_lea.sflag [#allocation7], %s186
          %s188 = sand.u32 %s75, 1
          %s189 = smul.addr %s188, 256
          %s190 = scalar_lea.vmem [#allocation6], %s189
          %s191 = smul.u32 64, %s25
          %s193 = ssub.s32 4096, 4096
          %194 = vsyncadd %s187, %s193
          %s195 = smul.addr %s191, 2
          %s196 = sadd.s32 %s24, %s195
          %s197 = smul.addr %s196, 64
          %s198 = scalar_lea.hbm %s1, %s197
          %s199 = sshll.u32 %s190, 4
          %s200 = int_to_ptr.vmem [resolvable:$true] %s199
          %205 = dma.hbm_to_vmem [thread:$0]  %s198, 4096, %s200, %s187, 128, 64, 4
        $region24: #{tpu_custom_call.1} parent=19 // pred_fallthru
          _
        // Predicated region
        $region25: #{tpu_custom_call.1} parent=19 // pred_check
          %p206 = pneg %p111
        $region26: #{tpu_custom_call.1} parent=19 // pred_check_branch
          %208 = sbr.rel (%p206) target = $region28
        $region27: #{tpu_custom_call.1} parent=19 // pred_region
          %p209 = scmp.lt.s32.totalorder %s24, 1
          %s210 = scalar_select %p209, %s24, 1
          %s211 = scalar_lea.vmem %s2, %s210
        $region28: #{tpu_custom_call.1} parent=19 // pred_fallthru
          _
      $region20: #{tpu_custom_call.1} parent=5 // pred_fallthru
        _
      %p212 = scmp.le.s32.totalorder 1, %s16
      %p213 = scmp.lt.s32.totalorder %s16, 3
      %p214 = pnand %p212, %p213
      %p215 = pneg %p214
      // Predicated region
      $region29: #{tpu_custom_call.1} parent=5 // pred_check
        _
      $region30: #{tpu_custom_call.1} parent=5 // pred_check_branch
        %217 = sbr.rel (%p214) target = $region32
      $region31: #{tpu_custom_call.1} parent=5 // pred_region
        %s218 = ssub.s32 %s16, 1
        // Predicated region
        $region33: #{tpu_custom_call.1} parent=31 // pred_check
          %p219 = pneg %p63
        $region34: #{tpu_custom_call.1} parent=31 // pred_check_branch
          %221 = sbr.rel (%p219) target = $region36
        $region35: #{tpu_custom_call.1} parent=31 // pred_region
          %222 = dma.done [#allocation4], 512
        $region36: #{tpu_custom_call.1} parent=31 // pred_fallthru
          _
        %s223 = sand.u32 %s78, 1
        %s224 = scalar_lea.sflag [#allocation7], %s223
        %s225 = sand.u32 %s78, 1
        %s226 = smul.addr %s225, 256
        %s227 = scalar_lea.vmem [#allocation6], %s226
        // Predicated region
        $region37: #{tpu_custom_call.1} parent=31 // pred_check
          %p228 = pneg %p91
        $region38: #{tpu_custom_call.1} parent=31 // pred_check_branch
          %230 = sbr.rel (%p228) target = $region40
        $region39: #{tpu_custom_call.1} parent=31 // pred_region
          %231 = dma.done %s224, 4096
        $region40: #{tpu_custom_call.1} parent=31 // pred_fallthru
          _
        %p232 = pneg %p63
        %p233 = pneg %p60
        %s234 = sand.u32 %s78, 1
        %s235 = scalar_lea.sflag [#allocation7], %s234
        %s236 = sand.u32 %s78, 1
        %s237 = smul.addr %s236, 256
        %s238 = scalar_lea.vmem [#allocation6], %s237
        %p239 = pneg %p91
        %p240 = pneg %p88
        %p241 = scmp.lt.s32.totalorder %s27, 1
        %s242 = scalar_select %p241, %s27, 1
        %s243 = scalar_lea.vmem %s2, %s242
        %p244 = pneg %p117
        %p245 = pneg %p114
        %p246 = pneg %p145
        %p247 = pneg %p142
        %s248 = sand.u32 %s132, 1
        %s249 = scalar_lea.sflag [#allocation5], %s248
        %s250 = sand.u32 %s132, 1
        %s251 = smul.addr %s250, 8
        %s252 = scalar_lea.vmem [#allocation8], %s251
        %s253 = smul.u32 2, %s26
        %s254 = smul.u32 4, %s28
        %s255 = smul.u32 64, %s28
        %p256 = scmp.lt.s32.totalorder %s27, 1
        %s257 = scalar_select %p256, %s27, 1
        %s258 = scalar_lea.vmem %s2, %s257
        %s259 = smul.u32 2, %s26
        %v261 = vld [vmem:[#allocation3] sm:$0xff]
        %v262 = vld [vmem:[#allocation3 + $0x8] sm:$0xff]
        %v263 = vld [vmem:[#allocation3 + $0x10] sm:$0xff]
        %v264 = vld [vmem:[#allocation3 + $0x18] sm:$0xff]
        %v265 = vld [vmem:[%s227] sm:$0xf]
        %v266 = vld [vmem:[%s227 + $0x4] sm:$0xf]
        %v267 = vld [vmem:[%s227 + $0x8] sm:$0xf]
        %v268 = vld [vmem:[%s227 + $0xc] sm:$0xf]
        %v269 = vld [vmem:[%s227 + $0x10] sm:$0xf]
        %v270 = vld [vmem:[%s227 + $0x14] sm:$0xf]
        %v271 = vld [vmem:[%s227 + $0x18] sm:$0xf]
        %v272 = vld [vmem:[%s227 + $0x1c] sm:$0xf]
        %v273 = vld [vmem:[%s227 + $0x20] sm:$0xf]
        %v274 = vld [vmem:[%s227 + $0x24] sm:$0xf]
        %v275 = vld [vmem:[%s227 + $0x28] sm:$0xf]
        %v276 = vld [vmem:[%s227 + $0x2c] sm:$0xf]
        %v277 = vld [vmem:[%s227 + $0x30] sm:$0xf]
        %v278 = vld [vmem:[%s227 + $0x34] sm:$0xf]
        %v279 = vld [vmem:[%s227 + $0x38] sm:$0xf]
        %v280 = vld [vmem:[%s227 + $0x3c] sm:$0xf]
        %v281 = vld [vmem:[%s227 + $0x40] sm:$0xf]
        %v282 = vld [vmem:[%s227 + $0x44] sm:$0xf]
        %v283 = vld [vmem:[%s227 + $0x48] sm:$0xf]
        %v284 = vld [vmem:[%s227 + $0x4c] sm:$0xf]
        %v285 = vld [vmem:[%s227 + $0x50] sm:$0xf]
        %v286 = vld [vmem:[%s227 + $0x54] sm:$0xf]
        %v287 = vld [vmem:[%s227 + $0x58] sm:$0xf]
        %v288 = vld [vmem:[%s227 + $0x5c] sm:$0xf]
        %v289 = vld [vmem:[%s227 + $0x60] sm:$0xf]
        %v290 = vld [vmem:[%s227 + $0x64] sm:$0xf]
        %v291 = vld [vmem:[%s227 + $0x68] sm:$0xf]
        %v292 = vld [vmem:[%s227 + $0x6c] sm:$0xf]
        %v293 = vld [vmem:[%s227 + $0x70] sm:$0xf]
        %v294 = vld [vmem:[%s227 + $0x74] sm:$0xf]
        %v295 = vld [vmem:[%s227 + $0x78] sm:$0xf]
        %v296 = vld [vmem:[%s227 + $0x7c] sm:$0xf]
        %v297 = vld [vmem:[%s227 + $0x80] sm:$0xf]
        %v298 = vld [vmem:[%s227 + $0x84] sm:$0xf]
        %v299 = vld [vmem:[%s227 + $0x88] sm:$0xf]
        %v300 = vld [vmem:[%s227 + $0x8c] sm:$0xf]
        %v301 = vld [vmem:[%s227 + $0x90] sm:$0xf]
        %v302 = vld [vmem:[%s227 + $0x94] sm:$0xf]
        %v303 = vld [vmem:[%s227 + $0x98] sm:$0xf]
        %v304 = vld [vmem:[%s227 + $0x9c] sm:$0xf]
        %v305 = vld [vmem:[%s227 + $0xa0] sm:$0xf]
        %v306 = vld [vmem:[%s227 + $0xa4] sm:$0xf]
        %v307 = vld [vmem:[%s227 + $0xa8] sm:$0xf]
        %v308 = vld [vmem:[%s227 + $0xac] sm:$0xf]
        %v309 = vld [vmem:[%s227 + $0xb0] sm:$0xf]
        %v310 = vld [vmem:[%s227 + $0xb4] sm:$0xf]
        %v311 = vld [vmem:[%s227 + $0xb8] sm:$0xf]
        %v312 = vld [vmem:[%s227 + $0xbc] sm:$0xf]
        %v313 = vld [vmem:[%s227 + $0xc0] sm:$0xf]
        %v314 = vld [vmem:[%s227 + $0xc4] sm:$0xf]
        %v315 = vld [vmem:[%s227 + $0xc8] sm:$0xf]
        %v316 = vld [vmem:[%s227 + $0xcc] sm:$0xf]
        %v317 = vld [vmem:[%s227 + $0xd0] sm:$0xf]
        %v318 = vld [vmem:[%s227 + $0xd4] sm:$0xf]
        %v319 = vld [vmem:[%s227 + $0xd8] sm:$0xf]
        %v320 = vld [vmem:[%s227 + $0xdc] sm:$0xf]
        %v321 = vld [vmem:[%s227 + $0xe0] sm:$0xf]
        %v322 = vld [vmem:[%s227 + $0xe4] sm:$0xf]
        %v323 = vld [vmem:[%s227 + $0xe8] sm:$0xf]
        %v324 = vld [vmem:[%s227 + $0xec] sm:$0xf]
        %v325 = vld [vmem:[%s227 + $0xf0] sm:$0xf]
        %v326 = vld [vmem:[%s227 + $0xf4] sm:$0xf]
        %v327 = vld [vmem:[%s227 + $0xf8] sm:$0xf]
        %v328 = vld [vmem:[%s227 + $0xfc] sm:$0xf]
        %v333 = vunpack.c.l.b16 %v261
        %v334 = vunpack.c.h.b16 %v261
        %v335 = vunpack.c.l.b16 %v262
        %v336 = vunpack.c.h.b16 %v262
        %v337 = vunpack.c.l.b16 %v263
        %v338 = vunpack.c.h.b16 %v263
        %v339 = vunpack.c.l.b16 %v264
        %v340 = vunpack.c.h.b16 %v264
        %v341 = vpack.c.b16 %v337, %v333
        %v342 = vpack.c.b16 %v338, %v334
        %v343 = vpack.c.b16 %v339, %v335
        %v344 = vpack.c.b16 %v340, %v336
        %v413 = vunpack.c.l.b16 %v265
        %v414 = vunpack.c.l.b16 %v266
        %v415 = vunpack.c.l.b16 %v267
        %v416 = vunpack.c.l.b16 %v268
        %v417 = vunpack.c.l.b16 %v269
        %v418 = vunpack.c.l.b16 %v270
        %v419 = vunpack.c.l.b16 %v271
        %v420 = vunpack.c.l.b16 %v272
        %v421 = vunpack.c.l.b16 %v273
        %v422 = vunpack.c.l.b16 %v274
        %v423 = vunpack.c.l.b16 %v275
        %v424 = vunpack.c.l.b16 %v276
        %v425 = vunpack.c.l.b16 %v277
        %v426 = vunpack.c.l.b16 %v278
        %v427 = vunpack.c.l.b16 %v279
        %v428 = vunpack.c.l.b16 %v280
        %v429 = vunpack.c.l.b16 %v281
        %v430 = vunpack.c.l.b16 %v282
        %v431 = vunpack.c.l.b16 %v283
        %v432 = vunpack.c.l.b16 %v284
        %v433 = vunpack.c.l.b16 %v285
        %v434 = vunpack.c.l.b16 %v286
        %v435 = vunpack.c.l.b16 %v287
        %v436 = vunpack.c.l.b16 %v288
        %v437 = vunpack.c.l.b16 %v289
        %v438 = vunpack.c.l.b16 %v290
        %v439 = vunpack.c.l.b16 %v291
        %v440 = vunpack.c.l.b16 %v292
        %v441 = vunpack.c.l.b16 %v293
        %v442 = vunpack.c.l.b16 %v294
        %v443 = vunpack.c.l.b16 %v295
        %v444 = vunpack.c.l.b16 %v296
        %v445 = vunpack.c.l.b16 %v297
        %v446 = vunpack.c.l.b16 %v298
        %v447 = vunpack.c.l.b16 %v299
        %v448 = vunpack.c.l.b16 %v300
        %v449 = vunpack.c.l.b16 %v301
        %v450 = vunpack.c.l.b16 %v302
        %v451 = vunpack.c.l.b16 %v303
        %v452 = vunpack.c.l.b16 %v304
        %v453 = vunpack.c.l.b16 %v305
        %v454 = vunpack.c.l.b16 %v306
        %v455 = vunpack.c.l.b16 %v307
        %v456 = vunpack.c.l.b16 %v308
        %v457 = vunpack.c.l.b16 %v309
        %v458 = vunpack.c.l.b16 %v310
        %v459 = vunpack.c.l.b16 %v311
        %v460 = vunpack.c.l.b16 %v312
        %v461 = vunpack.c.l.b16 %v313
        %v462 = vunpack.c.l.b16 %v314
        %v463 = vunpack.c.l.b16 %v315
        %v464 = vunpack.c.l.b16 %v316
        %v465 = vunpack.c.l.b16 %v317
        %v466 = vunpack.c.l.b16 %v318
        %v467 = vunpack.c.l.b16 %v319
        %v468 = vunpack.c.l.b16 %v320
        %v469 = vunpack.c.l.b16 %v321
        %v470 = vunpack.c.l.b16 %v322
        %v471 = vunpack.c.l.b16 %v323
        %v472 = vunpack.c.l.b16 %v324
        %v473 = vunpack.c.l.b16 %v325
        %v474 = vunpack.c.l.b16 %v326
        %v475 = vunpack.c.l.b16 %v327
        %v476 = vunpack.c.l.b16 %v328
        %v477 = vpack.c.b16 %v414, %v413
        %v478 = vpack.c.b16 %v416, %v415
        %v479 = vpack.c.b16 %v418, %v417
        %v480 = vpack.c.b16 %v420, %v419
        %v481 = vpack.c.b16 %v422, %v421
        %v482 = vpack.c.b16 %v424, %v423
        %v483 = vpack.c.b16 %v426, %v425
        %v484 = vpack.c.b16 %v428, %v427
        %v485 = vpack.c.b16 %v430, %v429
        %v486 = vpack.c.b16 %v432, %v431
        %v487 = vpack.c.b16 %v434, %v433
        %v488 = vpack.c.b16 %v436, %v435
        %v489 = vpack.c.b16 %v438, %v437
        %v490 = vpack.c.b16 %v440, %v439
        %v491 = vpack.c.b16 %v442, %v441
        %v492 = vpack.c.b16 %v444, %v443
        %v493 = vpack.c.b16 %v446, %v445
        %v494 = vpack.c.b16 %v448, %v447
        %v495 = vpack.c.b16 %v450, %v449
        %v496 = vpack.c.b16 %v452, %v451
        %v497 = vpack.c.b16 %v454, %v453
        %v498 = vpack.c.b16 %v456, %v455
        %v499 = vpack.c.b16 %v458, %v457
        %v500 = vpack.c.b16 %v460, %v459
        %v501 = vpack.c.b16 %v462, %v461
        %v502 = vpack.c.b16 %v464, %v463
        %v503 = vpack.c.b16 %v466, %v465
        %v504 = vpack.c.b16 %v468, %v467
        %v505 = vpack.c.b16 %v470, %v469
        %v506 = vpack.c.b16 %v472, %v471
        %v507 = vpack.c.b16 %v474, %v473
        %v508 = vpack.c.b16 %v476, %v475
        %541 = vmatprep.subr.bf16.mxu0 0
        %542 = vmatpush1.bf16.msra.mxu0 %v477
        %543 = vmatprep.subr.bf16.mxu0 0
        %544 = vmatpush1.bf16.msra.mxu0 %v478
        %545 = vmatprep.subr.bf16.mxu0 0
        %546 = vmatpush1.bf16.msra.mxu0 %v479
        %547 = vmatprep.subr.bf16.mxu0 0
        %548 = vmatpush1.bf16.msra.mxu0 %v480
        %549 = vmatprep.subr.bf16.mxu0 0
        %550 = vmatpush1.bf16.msra.mxu0 %v481
        %551 = vmatprep.subr.bf16.mxu0 0
        %552 = vmatpush1.bf16.msra.mxu0 %v482
        %553 = vmatprep.subr.bf16.mxu0 0
        %554 = vmatpush1.bf16.msra.mxu0 %v483
        %555 = vmatprep.subr.bf16.mxu0 0
        %556 = vmatpush1.bf16.msra.mxu0 %v484
        %557 = vmatprep.subr.bf16.mxu0 0
        %558 = vmatpush1.bf16.msra.mxu0 %v485
        %559 = vmatprep.subr.bf16.mxu0 0
        %560 = vmatpush1.bf16.msra.mxu0 %v486
        %561 = vmatprep.subr.bf16.mxu0 0
        %562 = vmatpush1.bf16.msra.mxu0 %v487
        %563 = vmatprep.subr.bf16.mxu0 0
        %564 = vmatpush1.bf16.msra.mxu0 %v488
        %565 = vmatprep.subr.bf16.mxu0 0
        %566 = vmatpush1.bf16.msra.mxu0 %v489
        %567 = vmatprep.subr.bf16.mxu0 0
        %568 = vmatpush1.bf16.msra.mxu0 %v490
        %569 = vmatprep.subr.bf16.mxu0 0
        %570 = vmatpush1.bf16.msra.mxu0 %v491
        %571 = vmatprep.subr.bf16.mxu0 0
        %572 = vmatpush1.bf16.msra.mxu0 %v492
        %573 = vmatprep.mubr.bf16.mxu0 %v342
        %574 = vmatmul.mubr.bf16.gmra.mrb[0].mxu0 %v341
        %v575 = vpop.f32.mrb[0].mxu0
        %v576 = vadd.f32 0.0, %v575
        %v577 = vpop.f32.mrb[0].mxu0
        %v578 = vpop.f32.mrb[0].mxu0
        %v579 = vadd.f32 0.0, %v578
        %v580 = vpop.f32.mrb[0].mxu0
        %581 = vdwg.mxu0
        %582 = vmatprep.subr.bf16.mxu0 0
        %583 = vmatpush1.bf16.msra.mxu0 %v493
        %584 = vmatprep.subr.bf16.mxu0 0
        %585 = vmatpush1.bf16.msra.mxu0 %v494
        %586 = vmatprep.subr.bf16.mxu0 0
        %587 = vmatpush1.bf16.msra.mxu0 %v495
        %588 = vmatprep.subr.bf16.mxu0 0
        %589 = vmatpush1.bf16.msra.mxu0 %v496
        %590 = vmatprep.subr.bf16.mxu0 0
        %591 = vmatpush1.bf16.msra.mxu0 %v497
        %592 = vmatprep.subr.bf16.mxu0 0
        %593 = vmatpush1.bf16.msra.mxu0 %v498
        %594 = vmatprep.subr.bf16.mxu0 0
        %595 = vmatpush1.bf16.msra.mxu0 %v499
        %596 = vmatprep.subr.bf16.mxu0 0
        %597 = vmatpush1.bf16.msra.mxu0 %v500
        %598 = vmatprep.subr.bf16.mxu0 0
        %599 = vmatpush1.bf16.msra.mxu0 %v501
        %600 = vmatprep.subr.bf16.mxu0 0
        %601 = vmatpush1.bf16.msra.mxu0 %v502
        %602 = vmatprep.subr.bf16.mxu0 0
        %603 = vmatpush1.bf16.msra.mxu0 %v503
        %604 = vmatprep.subr.bf16.mxu0 0
        %605 = vmatpush1.bf16.msra.mxu0 %v504
        %606 = vmatprep.subr.bf16.mxu0 0
        %607 = vmatpush1.bf16.msra.mxu0 %v505
        %608 = vmatprep.subr.bf16.mxu0 0
        %609 = vmatpush1.bf16.msra.mxu0 %v506
        %610 = vmatprep.subr.bf16.mxu0 0
        %611 = vmatpush1.bf16.msra.mxu0 %v507
        %612 = vmatprep.subr.bf16.mxu0 0
        %613 = vmatpush1.bf16.msra.mxu0 %v508
        %614 = vmatprep.mubr.bf16.mxu0 %v344
        %615 = vmatmul.mubr.bf16.gmra.mrb[0].mxu0 %v343
        %v616 = vpop.f32.mrb[0].mxu0
        %v617 = vadd.f32 %v576, %v616
        %v618 = vpop.f32.mrb[0].mxu0
        %v619 = vpop.f32.mrb[0].mxu0
        %v620 = vadd.f32 %v579, %v619
        %v621 = vpop.f32.mrb[0].mxu0
        %622 = vdwg.mxu0
        %p623 = scmp.eq.s32.totalorder %s28, 0
        // Predicated region
        $region41: #{tpu_custom_call.1} parent=31 // pred_check
          %p624 = pneg %p623
        $region42: #{tpu_custom_call.1} parent=31 // pred_check_branch
          %626 = sbr.rel (%p624) target = $region44
        $region43: #{tpu_custom_call.1} parent=31 // pred_region
          %627 = vst [vmem:[#allocation2] sm:$0xff] %v617
          %628 = vst [vmem:[#allocation2 + $0x8] sm:$0xff] %v620
        $region44: #{tpu_custom_call.1} parent=31 // pred_fallthru
          _
        %p629 = scmp.gt.s32.totalorder %s28, 0
        // Predicated region
        $region45: #{tpu_custom_call.1} parent=31 // pred_check
          %p630 = pneg %p629
        $region46: #{tpu_custom_call.1} parent=31 // pred_check_branch
          %632 = sbr.rel (%p630) target = $region48
        $region47: #{tpu_custom_call.1} parent=31 // pred_region
          %v633 = vld [vmem:[#allocation2] sm:$0xff]
          %v634 = vld [vmem:[#allocation2 + $0x8] sm:$0xff]
          %v635 = vadd.f32 %v633, %v617
          %v636 = vadd.f32 %v634, %v620
          %637 = vst [vmem:[#allocation2] sm:$0xff] %v635
          %638 = vst [vmem:[#allocation2 + $0x8] sm:$0xff] %v636
        $region48: #{tpu_custom_call.1} parent=31 // pred_fallthru
          _
        // Predicated region
        $region49: #{tpu_custom_call.1} parent=31 // pred_check
          %p639 = pneg %p623
        $region50: #{tpu_custom_call.1} parent=31 // pred_check_branch
          %641 = sbr.rel (%p639) target = $region52
        $region51: #{tpu_custom_call.1} parent=31 // pred_region
          %v642 = vld [vmem:[#allocation2] sm:$0xff]
          %v643 = vld [vmem:[#allocation2 + $0x8] sm:$0xff]
          %v644 = vld [vmem:[%s258] sm:$0x1]
          %v646 = vlaneseq
          %v647 = vshrl.u32 %v646, 7
          %v648 = vsub.s32 0, %v647
          %v649 = vrot.slane %v644, %v648
          %v651 = vadd.f32 %v642, %v649
          %v652 = vadd.f32 %v643, %v649
          %v653 = vmax.f32 %v651, 0.0
          %v654 = vmax.f32 %v652, 0.0
          %v655 = vpack.c.bf16 %v654, %v653
          %v657 = vunpack.c.l.b16 %v655
          %v658 = vunpack.c.h.b16 %v655
          %v659 = vpack.c.b16 %v657, %v657
          %v660 = vpack.c.b16 %v658, %v658
          %663 = vst [vmem:[%s252] sm:$0xf] %v659
          %664 = vst [vmem:[%s252 + $0x4] sm:$0xf] %v660
        $region52: #{tpu_custom_call.1} parent=31 // pred_fallthru
          _
        %s665 = sand.u32 %s132, 1
        %s666 = scalar_lea.sflag [#allocation5], %s665
        %s667 = sand.u32 %s132, 1
        %s668 = smul.addr %s667, 8
        %s669 = scalar_lea.vmem [#allocation8], %s668
        // Predicated region
        $region53: #{tpu_custom_call.1} parent=31 // pred_check
          %p670 = pneg %p142
        $region54: #{tpu_custom_call.1} parent=31 // pred_check_branch
          %672 = sbr.rel (%p670) target = $region56
        $region55: #{tpu_custom_call.1} parent=31 // pred_region
          %s673 = smul.u32 2, %s26
          %s675 = ssub.s32 128, 128
          %676 = vsyncadd %s666, %s675
          %s677 = smul.addr %s673, 2
          %s678 = sadd.s32 %s27, %s677
          %s679 = smul.addr %s678, 64
          %s680 = scalar_lea.hbm %s3, %s679
          %s681 = sshll.u32 %s669, 4
          %s682 = int_to_ptr.vmem [resolvable:$true] %s681
          %687 = dma.vmem_to_hbm [thread:$0]  %s682, 128, %s680, %s666, 64, 128, 4
        $region56: #{tpu_custom_call.1} parent=31 // pred_fallthru
          _
      $region32: #{tpu_custom_call.1} parent=5 // pred_fallthru
        _
      %p688 = scmp.le.s32.totalorder 2, %s16
      // Predicated region
      $region57: #{tpu_custom_call.1} parent=5 // pred_check
        %p689 = pneg %p688
      $region58: #{tpu_custom_call.1} parent=5 // pred_check_branch
        %691 = sbr.rel (%p689) target = $region60
      $region59: #{tpu_custom_call.1} parent=5 // pred_region
        %s692 = ssub.s32 %s16, 2
        // Predicated region
        $region61: #{tpu_custom_call.1} parent=59 // pred_check
          %p693 = pneg %p148
        $region62: #{tpu_custom_call.1} parent=59 // pred_check_branch
          %695 = sbr.rel (%p693) target = $region64
        $region63: #{tpu_custom_call.1} parent=59 // pred_region
          %s696 = sand.u32 %s133, 1
          %s697 = scalar_lea.sflag [#allocation5], %s696
          %s698 = sand.u32 %s133, 1
          %s699 = smul.addr %s698, 8
          %s700 = scalar_lea.vmem [#allocation8], %s699
          %701 = dma.done %s697, 128
        $region64: #{tpu_custom_call.1} parent=59 // pred_fallthru
          _
      $region60: #{tpu_custom_call.1} parent=5 // pred_fallthru
        _
    $region6: #{tpu_custom_call.1} parent=1 // loop_footer
      %s20 = sadd.s32 1, %s16
    $region7: #{tpu_custom_call.1} parent=1 // loop_footer_branch
      %15 = sbr.rel target = $region3
    $region8: #{tpu_custom_call.1} parent=1 // loop_exit
      _
    %702 = vsyncpa [#allocation4], 1
    %s703 = scalar_lea.sflag [#allocation4], 1
    %704 = vsyncpa %s703, 1
    %705 = vsyncpa [#allocation7], 1
    %s706 = scalar_lea.sflag [#allocation7], 1
    %707 = vsyncpa %s706, 1
    %708 = vsyncpa [#allocation5], 1
    %s709 = scalar_lea.sflag [#allocation5], 1
    %710 = vsyncpa %s709, 1

</llo_original>
